<compile_context>
chip_gen: v7x
topology: tpu7x:2x2x1
jax: 0.10.0
libtpu: 0.0.40
codegen_flags: <defaults>
</compile_context>

<pallas_src>
import jax
import jax.numpy as jnp
from jax.experimental import pallas as pl
from jax.experimental.pallas import tpu as pltpu


def _conv1x1_sub_kernel(w_ref, x_ref, o_ref):
    # w_ref: (1,) scalar conv weight in SMEM (scalar-path read, free slot)
    # x_ref / o_ref: full (1, 1, 64, 64) array in VMEM
    w = w_ref[0]
    xv = x_ref[...]
    # Same operation order as the reference graph: conv(x) first, then - x.
    o_ref[...] = xv * w - xv


def conv1x1_sub(x, weight):
    """x: f32 array of any shape (here (1,1,64,64)); weight: Conv1d weight of
    shape (1, 1, 1).  Returns conv(x) - x with identical shape/dtype."""
    w_scalar = weight.reshape(1).astype(x.dtype)  # (1,) scalar for SMEM

    return pl.pallas_call(
        _conv1x1_sub_kernel,
        out_shape=jax.ShapeDtypeStruct(x.shape, x.dtype),
        in_specs=[
            pl.BlockSpec(memory_space=pltpu.MemorySpace.SMEM),  # scalar weight
            pl.BlockSpec(memory_space=pltpu.MemorySpace.VMEM),  # whole x, 1 DMA
        ],
        out_specs=pl.BlockSpec(memory_space=pltpu.MemorySpace.VMEM),
        # Output reuses x's HBM buffer when donatable (x is dead after the op).
        input_output_aliases={1: 0},
    )(w_scalar, x)


if __name__ == "__main__":
    key = jax.random.PRNGKey(0)
    kx, kw = jax.random.split(key)

    # Input matching the reference module: (1, 1, 64, 64)
    x = jax.random.normal(kx, (1, 1, 64, 64), dtype=jnp.float32)

    # Deterministic Conv1d weight, shape (out_ch=1, in_ch=1, k=1),
    # PyTorch-style uniform(-1/sqrt(fan_in), 1/sqrt(fan_in)) with fan_in = 1.
    weight = jax.random.uniform(kw, (1, 1, 1), dtype=jnp.float32,
                                minval=-1.0, maxval=1.0)

    out = conv1x1_sub(x, weight)
    jax.block_until_ready(out)

    # Reference in plain JAX, same op order: (w*x) - x
    ref = x * weight.reshape(()) - x
    assert out.shape == x.shape and out.dtype == x.dtype
    assert jnp.allclose(out, ref, atol=1e-6, rtol=1e-6)

    print("KERNEL_OK")
</pallas_src>

<mosaic_0001>
module attributes {stable_mosaic.version = 11 : i64} {
  func.func @_conv1x1_sub_kernel(%arg0: memref<1xf32, #tpu.memory_space<smem>>, %arg1: memref<1x1x64x64xf32, #tpu.memory_space<vmem>>, %arg2: memref<1x1x64x64xf32, #tpu.memory_space<vmem>>) attributes {dimension_semantics = [], scalar_prefetch = 0 : i64, scratch_operands = 0 : i64, tpu.core_type = #tpu.core_type<tc>} {
    %c0 = arith.constant 0 : index
    %0 = memref.load %arg0[%c0] : memref<1xf32, #tpu.memory_space<smem>>
    %c0_0 = arith.constant 0 : index
    %c0_1 = arith.constant 0 : index
    %c0_2 = arith.constant 0 : index
    %c0_3 = arith.constant 0 : index
    %1 = vector.load %arg1[%c0_0, %c0_1, %c0_2, %c0_3] : memref<1x1x64x64xf32, #tpu.memory_space<vmem>>, vector<1x1x64x64xf32>
    %2 = vector.broadcast %0 : f32 to vector<1x1x64x64xf32>
    %3 = arith.mulf %1, %2 : vector<1x1x64x64xf32>
    %4 = arith.subf %3, %1 : vector<1x1x64x64xf32>
    %c0_4 = arith.constant 0 : index
    %c0_5 = arith.constant 0 : index
    %c0_6 = arith.constant 0 : index
    %c0_7 = arith.constant 0 : index
    %5 = vector.load %arg2[%c0_4, %c0_5, %c0_6, %c0_7] : memref<1x1x64x64xf32, #tpu.memory_space<vmem>>, vector<1x1x64x64xf32>
    tpu.vector_store %arg2[%c0_4, %c0_5, %c0_6, %c0_7], %4 {strides = array<i32>} : memref<1x1x64x64xf32, #tpu.memory_space<vmem>>, vector<1x1x64x64xf32>,
    return
  }
}

</mosaic_0001>

<llo_original>
// kernel: tpu_custom_call.1
$region0: #{tpu_custom_call.1}
  #allocation0 [shape = 'u32[]', space=smem, size = 0x4, offset = 0x4, fixed_abs, tag = 'smem constant byte address 0x4 - core index']
  #allocation1 [shape = 'u32[144,128]{1,0:T(1,128)}', space=vmem, size = 0x12000, scoped, tag = 'internal scratch']
  #allocation2 [shape = 'f32[1]{0:T(128)S(6)}', space=smem, size = 0x200, scoped, tag = 'scoped memory for tpu_custom_call.1']
  %s0 = inlined_call_operand.<no memory space> [shape: f32[1], index: 0, kind: input, shape index: {}]
  %s1 = inlined_call_operand.hbm [shape: f32[1,1,64,64], index: 1, kind: input, shape index: {}, may-alias: {1,2}]
  %s2 = inlined_call_operand.hbm [shape: f32[1,1,64,64], index: 2, kind: output, shape index: {}, may-alias: {1,2}]
  %s3 = sld [smem:[#allocation0]]
  $region22: #{tpu_custom_call.1} parent=0
    _
  %s5 = ssub.s32 1, %s3
  %s6 = scalar_select 0, %s5, %s3
  %7 = sst [smem:[#allocation2]] %s0
  $region1: #{tpu_custom_call.1} parent=0
    #allocation3 [shape = 'u8[32768]{0}', space=vmem, size = 0x8000, scoped, tag = 'input window, operand 1, single buffered']
    #allocation4 [shape = 's32[1]{0}', space=sflag, size = 0x4, scoped, tag = 'scoped memory for tpu_custom_call.1']
    #allocation5 [shape = 's32[1]{0}', space=sflag, size = 0x4, scoped, tag = 'scoped memory for tpu_custom_call.1']
    #allocation6 [shape = 'u8[32768]{0}', space=vmem, size = 0x8000, scoped, tag = 'output window, operand 0, single buffered']
    %8 = vsyncpa [#allocation4], 0
    %9 = vsyncpa [#allocation5], 0
    // Predicated region
    $region2: #{tpu_custom_call.1} parent=1 // pred_check
      _
    $region3: #{tpu_custom_call.1} parent=1 // pred_check_branch
      %11 = sbr.rel (0) target = $region5
    $region4: #{tpu_custom_call.1} parent=1 // pred_region
      _
    $region5: #{tpu_custom_call.1} parent=1 // pred_fallthru
      _
    // Predicated region
    $region6: #{tpu_custom_call.1} parent=1 // pred_check
      _
    $region7: #{tpu_custom_call.1} parent=1 // pred_check_branch
      %13 = sbr.rel (0) target = $region9
    $region8: #{tpu_custom_call.1} parent=1 // pred_region
      %s15 = ssub.s32 1024, 1024
      %16 = vsyncadd [#allocation4], %s15
      %s17 = sshll.u32 [#allocation3], 4
      %s18 = int_to_ptr.vmem [resolvable:$true] %s17
      %23 = dma.hbm_to_vmem [thread:$0]  %s1, 1024, %s18, [#allocation4], 128, 128, 8
    $region9: #{tpu_custom_call.1} parent=1 // pred_fallthru
      _
    // Predicated region
    $region10: #{tpu_custom_call.1} parent=1 // pred_check
      _
    $region11: #{tpu_custom_call.1} parent=1 // pred_check_branch
      %25 = sbr.rel (0) target = $region13
    $region12: #{tpu_custom_call.1} parent=1 // pred_region
      %26 = dma.done [#allocation4], 1024
    $region13: #{tpu_custom_call.1} parent=1 // pred_fallthru
      _
    %s27 = sld [smem:[#allocation2]]
    %v28 = vld [vmem:[#allocation3] sm:$0xff]
    %v29 = vld [vmem:[#allocation3 + $0x8] sm:$0xff]
    %v30 = vld [vmem:[#allocation3 + $0x10] sm:$0xff]
    %v31 = vld [vmem:[#allocation3 + $0x18] sm:$0xff]
    %v32 = vld [vmem:[#allocation3 + $0x20] sm:$0xff]
    %v33 = vld [vmem:[#allocation3 + $0x28] sm:$0xff]
    %v34 = vld [vmem:[#allocation3 + $0x30] sm:$0xff]
    %v35 = vld [vmem:[#allocation3 + $0x38] sm:$0xff]
    %v36 = vstv %s27
    %v37 = vmul.f32 %v28, %v36
    %v38 = vmul.f32 %v29, %v36
    %v39 = vmul.f32 %v30, %v36
    %v40 = vmul.f32 %v31, %v36
    %v41 = vmul.f32 %v32, %v36
    %v42 = vmul.f32 %v33, %v36
    %v43 = vmul.f32 %v34, %v36
    %v44 = vmul.f32 %v35, %v36
    %v45 = vsub.f32 %v37, %v28
    %v46 = vsub.f32 %v38, %v29
    %v47 = vsub.f32 %v39, %v30
    %v48 = vsub.f32 %v40, %v31
    %v49 = vsub.f32 %v41, %v32
    %v50 = vsub.f32 %v42, %v33
    %v51 = vsub.f32 %v43, %v34
    %v52 = vsub.f32 %v44, %v35
    %vm53 = vcmask 523264
    %54 = vst.msk [vmem:[#allocation6] sm:$0xff] %vm53, %v45
    %55 = vst.msk [vmem:[#allocation6 + $0x8] sm:$0xff] %vm53, %v46
    %56 = vst.msk [vmem:[#allocation6 + $0x10] sm:$0xff] %vm53, %v47
    %57 = vst.msk [vmem:[#allocation6 + $0x18] sm:$0xff] %vm53, %v48
    %58 = vst.msk [vmem:[#allocation6 + $0x20] sm:$0xff] %vm53, %v49
    %59 = vst.msk [vmem:[#allocation6 + $0x28] sm:$0xff] %vm53, %v50
    %60 = vst.msk [vmem:[#allocation6 + $0x30] sm:$0xff] %vm53, %v51
    %61 = vst.msk [vmem:[#allocation6 + $0x38] sm:$0xff] %vm53, %v52
    // Predicated region
    $region14: #{tpu_custom_call.1} parent=1 // pred_check
      _
    $region15: #{tpu_custom_call.1} parent=1 // pred_check_branch
      %63 = sbr.rel (0) target = $region17
    $region16: #{tpu_custom_call.1} parent=1 // pred_region
      %s65 = ssub.s32 1024, 1024
      %66 = vsyncadd [#allocation5], %s65
      %s67 = sshll.u32 [#allocation6], 4
      %s68 = int_to_ptr.vmem [resolvable:$true] %s67
      %73 = dma.vmem_to_hbm [thread:$0]  %s68, 1024, %s2, [#allocation5], 128, 128, 8
    $region17: #{tpu_custom_call.1} parent=1 // pred_fallthru
      _
    // Predicated region
    $region18: #{tpu_custom_call.1} parent=1 // pred_check
      _
    $region19: #{tpu_custom_call.1} parent=1 // pred_check_branch
      %75 = sbr.rel (0) target = $region21
    $region20: #{tpu_custom_call.1} parent=1 // pred_region
      %76 = dma.done [#allocation5], 1024
    $region21: #{tpu_custom_call.1} parent=1 // pred_fallthru
      _
    %77 = vsyncpa [#allocation4], 1
    %78 = vsyncpa [#allocation5], 1

</llo_original>
